<compile_context>
chip_gen: v7x
topology: tpu7x:2x2x1
jax: 0.10.0
libtpu: 0.0.40
codegen_flags: <defaults>
</compile_context>

<pallas_src>
import jax
import jax.numpy as jnp
from jax.experimental import pallas as pl
from jax.experimental.pallas import tpu as pltpu

LANES = 128
DEFAULT_BLOCK_ROWS = 4096  # 4096 x 128 f32 = 2 MiB per input tile


def _bce_logits(x, y, pw):
    """Numerically-stable BCE-with-logits elementwise loss (PyTorch form)."""
    log_weight = 1.0 + (pw - 1.0) * y
    return (1.0 - y) * x + log_weight * (
        jnp.log1p(jnp.exp(-jnp.abs(x))) + jnp.maximum(-x, 0.0)
    )


def _make_kernel(pw, rows, block_rows, blocks_per_split, needs_mask):
    def kernel(x_ref, y_ref, out_ref):
        c = pl.program_id(0)  # split (TensorCore) index
        i = pl.program_id(1)  # block index within the split

        @pl.when(i == 0)
        def _():
            out_ref[...] = jnp.zeros_like(out_ref)

        x = x_ref[...].astype(jnp.float32)
        y = y_ref[...].astype(jnp.float32)
        loss = _bce_logits(x, y, pw)

        if needs_mask:
            # Mask rows past the logical end (partially / fully OOB blocks).
            # Row-index comparison is int32-safe up to 2^31 rows (~2^38 elems).
            row = jax.lax.broadcasted_iota(jnp.int32, loss.shape, 0)
            block_start = (c * blocks_per_split + i) * block_rows
            loss = jnp.where(block_start + row < rows, loss, 0.0)

        # Reduce the tile to a single (8, 128) vreg (tile-aligned free reshape,
        # then pure VPU adds) and accumulate into the resident output block.
        partial = loss.reshape(block_rows // 8, 8, LANES).sum(axis=0)
        out_ref[...] += partial[None, :, :]

    return kernel


def _simple_loss_impl(ypred, ytgt, pos_weight):
    """Mean BCEWithLogitsLoss(pos_weight) over all elements of ypred/ytgt."""
    assert ypred.shape == ytgt.shape
    pw = float(pos_weight)
    n = ypred.size

    x = ypred.reshape(-1)
    y = ytgt.reshape(-1)

    full_rows = n // LANES
    tail = n - full_rows * LANES

    tail_sum = jnp.float32(0.0)
    if tail:
        # <128-element tail handled in plain JAX (no full-array pad copy).
        xt = x[full_rows * LANES:].astype(jnp.float32)
        yt = y[full_rows * LANES:].astype(jnp.float32)
        tail_sum = jnp.sum(_bce_logits(xt, yt, pw))
        if full_rows == 0:
            return tail_sum / jnp.float32(n)
        x = x[: full_rows * LANES]
        y = y[: full_rows * LANES]

    rows = full_rows
    x = x.reshape(rows, LANES)
    y = y.reshape(rows, LANES)

    # Big tiles for large inputs; shrink (to a multiple of 8 sublanes) for small ones.
    block_rows = min(DEFAULT_BLOCK_ROWS, ((rows + 7) // 8) * 8)
    total_blocks = pl.cdiv(rows, block_rows)
    # Leading "parallel" axis: lets v7x's 2 TensorCores each take half the blocks.
    num_splits = 2 if total_blocks >= 2 else 1
    blocks_per_split = pl.cdiv(total_blocks, num_splits)
    needs_mask = (num_splits * blocks_per_split * block_rows) != rows

    kernel = _make_kernel(pw, rows, block_rows, blocks_per_split, needs_mask)

    def row_index(c, i):
        # Clamp so a fully-OOB trailing block (odd total_blocks with 2 splits)
        # re-reads the last valid block; its contribution is masked to zero.
        blk = jnp.minimum(c * blocks_per_split + i, total_blocks - 1)
        return (blk, 0)

    in_spec = pl.BlockSpec((block_rows, LANES), row_index)
    out_spec = pl.BlockSpec((1, 8, LANES), lambda c, i: (c, 0, 0))

    itemsize = jnp.dtype(x.dtype).itemsize
    cost = pl.CostEstimate(
        flops=6 * n,
        transcendentals=2 * n,
        bytes_accessed=2 * n * itemsize + num_splits * 8 * LANES * 4,
    )

    partials = pl.pallas_call(
        kernel,
        out_shape=jax.ShapeDtypeStruct((num_splits, 8, LANES), jnp.float32),
        grid_spec=pltpu.PrefetchScalarGridSpec(
            num_scalar_prefetch=0,
            grid=(num_splits, blocks_per_split),
            in_specs=[in_spec, in_spec],
            out_specs=out_spec,
        ),
        compiler_params=pltpu.CompilerParams(
            dimension_semantics=("parallel", "arbitrary"),
            vmem_limit_bytes=32 * 1024 * 1024,
        ),
        cost_estimate=cost,
    )(x, y)

    return (jnp.sum(partials) + tail_sum) / jnp.float32(n)


# pos_weight is a static module parameter -> bake it into the compiled kernel.
simple_loss = jax.jit(_simple_loss_impl, static_argnums=(2,))


if __name__ == "__main__":
    pos_weight = 2.5
    key = jax.random.PRNGKey(0)

    def ref_loss(yp, yt):
        xr = yp.astype(jnp.float32)
        yr = yt.astype(jnp.float32)
        return jnp.mean(_bce_logits(xr, yr, pos_weight))

    # Case 1: NCHW-like shape, numel a multiple of 128 (no masking, no tail).
    k1, k2 = jax.random.split(key)
    ypred = jax.random.normal(k1, (2, 4, 16, 16), dtype=jnp.float32)
    ytgt = (jax.random.uniform(k2, (2, 4, 16, 16)) > 0.5).astype(jnp.float32)
    out1 = jax.block_until_ready(simple_loss(ypred, ytgt, pos_weight))
    ref1 = ref_loss(ypred, ytgt)
    assert jnp.allclose(out1, ref1, rtol=1e-5, atol=1e-5), (out1, ref1)

    # Case 2: rows not a multiple of 8 -> exercises the OOB-row mask path.
    k3, k4 = jax.random.split(k1)
    yp2 = jax.random.normal(k3, (2, 5, 128), dtype=jnp.float32)
    yt2 = (jax.random.uniform(k4, (2, 5, 128)) > 0.5).astype(jnp.float32)
    out2 = jax.block_until_ready(simple_loss(yp2, yt2, pos_weight))
    ref2 = ref_loss(yp2, yt2)
    assert jnp.allclose(out2, ref2, rtol=1e-5, atol=1e-5), (out2, ref2)

    # Case 3: numel not a multiple of 128 -> exercises the plain-JAX tail path.
    k5, k6 = jax.random.split(k2)
    yp3 = jax.random.normal(k5, (2, 4, 15, 17), dtype=jnp.float32)
    yt3 = (jax.random.uniform(k6, (2, 4, 15, 17)) > 0.5).astype(jnp.float32)
    out3 = jax.block_until_ready(simple_loss(yp3, yt3, pos_weight))
    ref3 = ref_loss(yp3, yt3)
    assert jnp.allclose(out3, ref3, rtol=1e-5, atol=1e-5), (out3, ref3)

    print("KERNEL_OK")
</pallas_src>

<mosaic_0001>
module attributes {stable_mosaic.version = 11 : i64} {
  func.func @kernel(%arg0: i32, %arg1: i32, %arg2: memref<16x128xf32, #tpu.memory_space<vmem>>, %arg3: memref<16x128xf32, #tpu.memory_space<vmem>>, %arg4: memref<1x8x128xf32, #tpu.memory_space<vmem>>) attributes {dimension_semantics = [#tpu.dimension_semantics<parallel>, #tpu.dimension_semantics<arbitrary>], iteration_bounds = array<i64: 1, 1>, scalar_prefetch = 0 : i64, scratch_operands = 0 : i64, tpu.core_type = #tpu.core_type<tc>, window_params = [{transform_indices = @transform_0, window_bounds = array<i64: 16, 128>}, {transform_indices = @transform_1, window_bounds = array<i64: 16, 128>}, {transform_indices = @transform_2, window_bounds = array<i64: 1, 8, 128>}]} {
    %c0_i32 = arith.constant 0 : i32
    %0 = arith.cmpi eq, %arg1, %c0_i32 : i32
    %1 = arith.extui %0 : i1 to i32
    %c0_i32_0 = arith.constant 0 : i32
    %2 = arith.cmpi ne, %1, %c0_i32_0 : i32
    scf.if %2 {
      %cst_16 = arith.constant 0.000000e+00 : f32
      %30 = vector.broadcast %cst_16 : f32 to vector<1x8x128xf32>
      %c0_17 = arith.constant 0 : index
      %c0_18 = arith.constant 0 : index
      %c0_19 = arith.constant 0 : index
      %31 = vector.load %arg4[%c0_17, %c0_18, %c0_19] : memref<1x8x128xf32, #tpu.memory_space<vmem>>, vector<1x8x128xf32>
      tpu.vector_store %arg4[%c0_17, %c0_18, %c0_19], %30 {strides = array<i32>} : memref<1x8x128xf32, #tpu.memory_space<vmem>>, vector<1x8x128xf32>,
    } else {
    }
    %c0 = arith.constant 0 : index
    %c0_1 = arith.constant 0 : index
    %3 = vector.load %arg2[%c0, %c0_1] : memref<16x128xf32, #tpu.memory_space<vmem>>, vector<16x128xf32>
    %c0_2 = arith.constant 0 : index
    %c0_3 = arith.constant 0 : index
    %4 = vector.load %arg3[%c0_2, %c0_3] : memref<16x128xf32, #tpu.memory_space<vmem>>, vector<16x128xf32>
    %cst = arith.constant 1.500000e+00 : f32
    %5 = vector.broadcast %cst : f32 to vector<16x128xf32>
    %6 = arith.mulf %5, %4 : vector<16x128xf32>
    %cst_4 = arith.constant 1.000000e+00 : f32
    %7 = vector.broadcast %cst_4 : f32 to vector<16x128xf32>
    %8 = arith.addf %7, %6 : vector<16x128xf32>
    %cst_5 = arith.constant 1.000000e+00 : f32
    %9 = vector.broadcast %cst_5 : f32 to vector<16x128xf32>
    %10 = arith.subf %9, %4 : vector<16x128xf32>
    %11 = arith.mulf %10, %3 : vector<16x128xf32>
    %12 = math.absf %3 : vector<16x128xf32>
    %cst_6 = arith.constant 0.000000e+00 : f32
    %13 = vector.broadcast %cst_6 : f32 to vector<16x128xf32>
    %14 = arith.subf %13, %12 : vector<16x128xf32>
    %15 = math.exp %14 : vector<16x128xf32>
    %16 = math.log1p %15 : vector<16x128xf32>
    %cst_7 = arith.constant 0.000000e+00 : f32
    %17 = vector.broadcast %cst_7 : f32 to vector<16x128xf32>
    %18 = arith.subf %17, %3 : vector<16x128xf32>
    %cst_8 = arith.constant 0.000000e+00 : f32
    %19 = vector.broadcast %cst_8 : f32 to vector<16x128xf32>
    %20 = arith.maximumf %18, %19 : vector<16x128xf32>
    %21 = arith.addf %16, %20 : vector<16x128xf32>
    %22 = arith.mulf %8, %21 : vector<16x128xf32>
    %23 = arith.addf %11, %22 : vector<16x128xf32>
    %24 = vector.shape_cast %23 : vector<16x128xf32> to vector<2x8x128xf32>
    %cst_9 = arith.constant dense<0.000000e+00> : vector<8x128xf32>
    %25 = vector.multi_reduction <add>, %24, %cst_9 [0] : vector<2x8x128xf32> to vector<8x128xf32>
    %c0_10 = arith.constant 0 : index
    %c0_11 = arith.constant 0 : index
    %c0_12 = arith.constant 0 : index
    %26 = vector.load %arg4[%c0_10, %c0_11, %c0_12] : memref<1x8x128xf32, #tpu.memory_space<vmem>>, vector<1x8x128xf32>
    %27 = vector.shape_cast %25 : vector<8x128xf32> to vector<1x8x128xf32>
    %28 = arith.addf %26, %27 : vector<1x8x128xf32>
    %c0_13 = arith.constant 0 : index
    %c0_14 = arith.constant 0 : index
    %c0_15 = arith.constant 0 : index
    %29 = vector.load %arg4[%c0_13, %c0_14, %c0_15] : memref<1x8x128xf32, #tpu.memory_space<vmem>>, vector<1x8x128xf32>
    tpu.vector_store %arg4[%c0_13, %c0_14, %c0_15], %28 {strides = array<i32>} : memref<1x8x128xf32, #tpu.memory_space<vmem>>, vector<1x8x128xf32>,
    return
  }
  func.func @transform_0(%arg0: i32, %arg1: i32) -> (i32, i32) {
    %c1_i32 = arith.constant 1 : i32
    %0 = arith.muli %arg0, %c1_i32 : i32
    %1 = arith.addi %0, %arg1 : i32
    %c0_i32 = arith.constant 0 : i32
    %2 = arith.minsi %1, %c0_i32 : i32
    %c0_i32_0 = arith.constant 0 : i32
    %c0_i32_1 = arith.constant 0 : i32
    return %2, %c0_i32_0 : i32, i32
  }
  func.func @transform_1(%arg0: i32, %arg1: i32) -> (i32, i32) {
    %c1_i32 = arith.constant 1 : i32
    %0 = arith.muli %arg0, %c1_i32 : i32
    %1 = arith.addi %0, %arg1 : i32
    %c0_i32 = arith.constant 0 : i32
    %2 = arith.minsi %1, %c0_i32 : i32
    %c0_i32_0 = arith.constant 0 : i32
    %c0_i32_1 = arith.constant 0 : i32
    return %2, %c0_i32_0 : i32, i32
  }
  func.func @transform_2(%arg0: i32, %arg1: i32) -> (i32, i32, i32) {
    %c0_i32 = arith.constant 0 : i32
    %c0_i32_0 = arith.constant 0 : i32
    %c0_i32_1 = arith.constant 0 : i32
    return %arg0, %c0_i32, %c0_i32_0 : i32, i32, i32
  }
}

</mosaic_0001>

<llo_original>
// kernel: _simple_loss_impl.1
$region0: #{_simple_loss_impl.1}
  #allocation0 [shape = 'u32[]', space=smem, size = 0x4, offset = 0x4, fixed_abs, tag = 'smem constant byte address 0x4 - core index']
  #allocation1 [shape = 'u32[144,128]{1,0:T(1,128)}', space=vmem, size = 0x12000, scoped, tag = 'internal scratch']
  %s0 = inlined_call_operand.vmem [shape: f32[16,128], index: 0, kind: input, shape index: {}]
  %s1 = inlined_call_operand.vmem [shape: f32[16,128], index: 1, kind: input, shape index: {}]
  %s2 = inlined_call_operand.vmem [shape: f32[1,8,128], index: 2, kind: output, shape index: {}]
  %s3 = sld [smem:[#allocation0]]
  $region22: #{_simple_loss_impl.1} parent=0
    _
  %s5 = ssub.s32 1, %s3
  %s6 = scalar_select 0, %s5, %s3
  // Predicated region
  $region2: #{_simple_loss_impl.1} parent=0 // pred_check
    _
  $region3: #{_simple_loss_impl.1} parent=0 // pred_check_branch
    %8 = sbr.rel (0) target = $region5
  $region4: #{_simple_loss_impl.1} parent=0 // pred_region
    %s9 = sadd.s32 0, 0
    %p10 = scmp.lt.s32.totalorder %s9, 0
    %s11 = scalar_select %p10, %s9, 0
    %s12 = smul.u32 2, %s11
    %p13 = scmp.lt.s32.totalorder %s12, 1
    %s14 = scalar_select %p13, %s12, 1
    %s15 = smul.addr %s14, 8
    %s16 = scalar_lea.vmem %s0, %s15
    %s17 = sadd.s32 0, 0
    %p18 = scmp.lt.s32.totalorder %s17, 0
    %s19 = scalar_select %p18, %s17, 0
    %s20 = smul.u32 2, %s19
  $region5: #{_simple_loss_impl.1} parent=0 // pred_fallthru
    _
  // Predicated region
  $region6: #{_simple_loss_impl.1} parent=0 // pred_check
    _
  $region7: #{_simple_loss_impl.1} parent=0 // pred_check_branch
    %22 = sbr.rel (0) target = $region9
  $region8: #{_simple_loss_impl.1} parent=0 // pred_region
    %s23 = sadd.s32 0, 0
    %p24 = scmp.lt.s32.totalorder %s23, 0
    %s25 = scalar_select %p24, %s23, 0
    %s26 = smul.u32 2, %s25
    %p27 = scmp.lt.s32.totalorder %s26, 1
    %s28 = scalar_select %p27, %s26, 1
    %s29 = smul.addr %s28, 8
    %s30 = scalar_lea.vmem %s1, %s29
    %s31 = sadd.s32 0, 0
    %p32 = scmp.lt.s32.totalorder %s31, 0
    %s33 = scalar_select %p32, %s31, 0
    %s34 = smul.u32 2, %s33
  $region9: #{_simple_loss_impl.1} parent=0 // pred_fallthru
    _
  %s35 = sadd.s32 0, 0
  %p36 = scmp.lt.s32.totalorder %s35, 0
  %s37 = scalar_select %p36, %s35, 0
  %s38 = smul.u32 2, %s37
  %p39 = scmp.lt.s32.totalorder %s38, 1
  %s40 = scalar_select %p39, %s38, 1
  %s41 = smul.addr %s40, 8
  %s42 = scalar_lea.vmem %s0, %s41
  %s43 = sadd.s32 0, 0
  %p44 = scmp.lt.s32.totalorder %s43, 0
  %s45 = scalar_select %p44, %s43, 0
  %s46 = smul.u32 2, %s45
  %p47 = scmp.lt.s32.totalorder %s46, 1
  %s48 = scalar_select %p47, %s46, 1
  %s49 = smul.addr %s48, 8
  %s50 = scalar_lea.vmem %s1, %s49
  %s51 = sadd.s32 0, 0
  %p52 = scmp.lt.s32.totalorder %s51, 0
  %s53 = scalar_select %p52, %s51, 0
  %s54 = smul.u32 2, %s53
  %p55 = scmp.lt.s32.totalorder %s54, 1
  %s56 = scalar_select %p55, %s54, 1
  %s57 = smul.addr %s56, 8
  %s58 = scalar_lea.vmem %s0, %s57
  %s59 = sadd.s32 0, 0
  %p60 = scmp.lt.s32.totalorder %s59, 0
  %s61 = scalar_select %p60, %s59, 0
  %s62 = smul.u32 2, %s61
  %s63 = sadd.s32 0, 0
  %p64 = scmp.lt.s32.totalorder %s63, 0
  %s65 = scalar_select %p64, %s63, 0
  %s66 = smul.u32 2, %s65
  %p67 = scmp.lt.s32.totalorder %s66, 1
  %s68 = scalar_select %p67, %s66, 1
  %s69 = smul.addr %s68, 8
  %s70 = scalar_lea.vmem %s1, %s69
  %s71 = sadd.s32 0, 0
  %p72 = scmp.lt.s32.totalorder %s71, 0
  %s73 = scalar_select %p72, %s71, 0
  %s74 = smul.u32 2, %s73
  %p75 = scmp.eq.s32.totalorder 0, 0
  // Predicated region
  $region10: #{_simple_loss_impl.1} parent=0 // pred_check
    %p76 = pneg %p75
  $region11: #{_simple_loss_impl.1} parent=0 // pred_check_branch
    %78 = sbr.rel (%p76) target = $region13
  $region12: #{_simple_loss_impl.1} parent=0 // pred_region
    %79 = vst [vmem:[%s2] sm:$0xff] 0.0
  $region13: #{_simple_loss_impl.1} parent=0 // pred_fallthru
    _
  %v80 = vld [vmem:[%s58] sm:$0xff]
  %v81 = vld [vmem:[%s58 + $0x8] sm:$0xff]
  %v82 = vld [vmem:[%s70] sm:$0xff]
  %v83 = vld [vmem:[%s70 + $0x8] sm:$0xff]
  %v84 = vmul.f32 %v82, 1.5
  %v85 = vmul.f32 %v83, 1.5
  %v86 = vadd.f32 %v84, 1.0
  %v87 = vadd.f32 %v85, 1.0
  %v88 = vsub.f32 1.0, %v82
  %v89 = vsub.f32 1.0, %v83
  %v90 = vmul.f32 %v88, %v80
  %v91 = vmul.f32 %v89, %v81
  %v92 = vand.u32 2147483647, %v80
  %v93 = vand.u32 2147483647, %v81
  %v94 = vsub.f32 0.0, %v92
  %v95 = vsub.f32 0.0, %v93
  %v96 = vmul.f32 %v94, 1.442695
  %v97 = vpow.pop %v96
  %v98 = vmul.f32 %v95, 1.442695
  %v99 = vpow.pop %v98
  %v100 = vadd.f32 %v97, 1.0
  %v101 = vlog2.pop %v100
  %v102 = vmul.f32 %v101, 0.6931472
  %v103 = vmul.f32 -0.5, %v97
  %v104 = vadd.f32 %v103, 1.0
  %v105 = vmul.f32 %v104, %v97
  %v106 = vand.u32 2147483647, %v97
  %vm107 = vcmp.lt.f32.partialorder %v106, 0.0004427343
  %v108 = vsel %vm107, %v105, %v102
  %v109 = vadd.f32 %v99, 1.0
  %v110 = vlog2.pop %v109
  %v111 = vmul.f32 %v110, 0.6931472
  %v112 = vmul.f32 -0.5, %v99
  %v113 = vadd.f32 %v112, 1.0
  %v114 = vmul.f32 %v113, %v99
  %v115 = vand.u32 2147483647, %v99
  %vm116 = vcmp.lt.f32.partialorder %v115, 0.0004427343
  %v117 = vsel %vm116, %v114, %v111
  %v118 = vsub.f32 0.0, %v80
  %v119 = vsub.f32 0.0, %v81
  %v120 = vmax.f32 %v118, 0.0
  %v121 = vmax.f32 %v119, 0.0
  %v122 = vadd.f32 %v108, %v120
  %v123 = vadd.f32 %v117, %v121
  %v124 = vmul.f32 %v86, %v122
  %v125 = vmul.f32 %v87, %v123
  %v126 = vadd.f32 %v90, %v124
  %v127 = vadd.f32 %v91, %v125
  %v128 = vadd.f32 %v126, %v127
  %v129 = vld [vmem:[%s2] sm:$0xff]
  %v130 = vadd.f32 %v129, %v128
  %131 = vst [vmem:[%s2] sm:$0xff] %v130
  // Predicated region
  $region14: #{_simple_loss_impl.1} parent=0 // pred_check
    _
  $region15: #{_simple_loss_impl.1} parent=0 // pred_check_branch
    %133 = sbr.rel (0) target = $region17
  $region16: #{_simple_loss_impl.1} parent=0 // pred_region
    _
  $region17: #{_simple_loss_impl.1} parent=0 // pred_fallthru
    _
  // Predicated region
  $region18: #{_simple_loss_impl.1} parent=0 // pred_check
    _
  $region19: #{_simple_loss_impl.1} parent=0 // pred_check_branch
    %135 = sbr.rel (0) target = $region21
  $region20: #{_simple_loss_impl.1} parent=0 // pred_region
    _
  $region21: #{_simple_loss_impl.1} parent=0 // pred_fallthru
    _

</llo_original>
